<compile_context>
chip_gen: v7x
topology: tpu7x:2x2x1
jax: 0.10.0
libtpu: 0.0.40
codegen_flags: <defaults>
</compile_context>

<pallas_src>
import functools

import jax
import jax.numpy as jnp
from jax import lax
from jax.experimental import pallas as pl
from jax.experimental.pallas import tpu as pltpu


def _round_up(n, m):
    return ((n + m - 1) // m) * m


# --------------------------------------------------------------------------
# Kernel
# --------------------------------------------------------------------------
def _lstm_fc_kernel(x_ref, w_ref, out_ref, *, T, BP, D, H, offs, mm_dtype):
    # x_ref:   (T*BP, D)      time-major input, batch padded to BP=8 sublanes
    # w_ref:   (R, lane_w)    packed weight slab (w_ih^T | w_hh^T | b | w_fc^T | b_fc)
    # out_ref: (T*BP, lane_w) logits (lanes >= A are zero), lane-dense store
    f32 = jnp.float32
    G = 4 * H

    # Static, 8-row-aligned slab slices.
    w_ih = w_ref[offs["w_ih"]:offs["w_ih"] + D, :G].astype(mm_dtype)   # (D, 4H)
    w_hh = w_ref[offs["w_hh"]:offs["w_hh"] + H, :G].astype(mm_dtype)   # (H, 4H)
    b = w_ref[offs["b"]:offs["b"] + 1, :G]                             # (1, 4H) f32
    w_fc = w_ref[offs["w_fc"]:offs["w_fc"] + H, :].astype(mm_dtype)    # (H, lane_w)
    b_fc = w_ref[offs["b_fc"]:offs["b_fc"] + 1, :]                     # (1, lane_w) f32

    # Hoisted input projection: ONE batched MXU matmul + bias, out of the loop.
    xg = jnp.dot(x_ref[...].astype(mm_dtype), w_ih,
                 preferred_element_type=f32) + b                       # (T*BP, 4H)

    h = jnp.zeros((BP, H), f32)
    c = jnp.zeros((BP, H), f32)
    hs = []

    # Fully-unrolled recurrence: only h @ W_hh stays on the serial chain;
    # each xg slice is a sublane-aligned (BP=8, 4H) tile.
    for t in range(T):
        gates = xg[t * BP:(t + 1) * BP, :] + jnp.dot(
            h.astype(mm_dtype), w_hh, preferred_element_type=f32)      # (BP, 4H)
        sg = jax.nn.sigmoid(gates)      # one full-width sigmoid pass (EUP)
        tg = jnp.tanh(gates)            # one full-width tanh pass    (EUP)
        i_g = sg[:, 0 * H:1 * H]
        f_g = sg[:, 1 * H:2 * H]
        g_g = tg[:, 2 * H:3 * H]
        o_g = sg[:, 3 * H:4 * H]
        c = f_g * c + i_g * g_g
        h = o_g * jnp.tanh(c)
        hs.append(h)

    # Hidden states stay in vregs (no VMEM scratch round-trip); one FC matmul
    # + one full lane-dense output store for the whole sequence.
    hs_all = jnp.concatenate(hs, axis=0)                               # (T*BP, H)
    logits = jnp.dot(hs_all.astype(mm_dtype), w_fc,
                     preferred_element_type=f32) + b_fc                # (T*BP, lane_w)
    out_ref[...] = logits.astype(out_ref.dtype)


# --------------------------------------------------------------------------
# One-time parameter packing (outside the hot path)
# --------------------------------------------------------------------------
def pack_params(params):
    """Transpose/combine/pad all weights into ONE lane-dense (R, 128k) slab."""
    w_ih, w_hh = params["w_ih"], params["w_hh"]      # (4H, D), (4H, H)
    b_ih, b_hh = params["b_ih"], params["b_hh"]      # (4H,), (4H,)
    w_fc, b_fc = params["w_fc"], params["b_fc"]      # (A, H), (A,)
    H = w_hh.shape[1]
    D = w_ih.shape[1]
    A = w_fc.shape[0]
    lane_w = _round_up(max(4 * H, A, 128), 128)

    def pad_lanes(m):
        m = jnp.asarray(m, jnp.float32)
        return jnp.pad(m, ((0, 0), (0, lane_w - m.shape[1])))

    blocks = [
        ("w_ih", pad_lanes(w_ih.T)),                        # (D, lane_w)
        ("w_hh", pad_lanes(w_hh.T)),                        # (H, lane_w)
        ("b", pad_lanes((b_ih + b_hh).reshape(1, -1))),     # (1, lane_w)
        ("w_fc", pad_lanes(w_fc.T)),                        # (H, lane_w)
        ("b_fc", pad_lanes(b_fc.reshape(1, -1))),           # (1, lane_w)
    ]
    offsets = {}
    rows = []
    off = 0
    for name, blk in blocks:
        offsets[name] = off
        r = blk.shape[0]
        rp = _round_up(r, 8)                 # keep every block 8-row aligned
        rows.append(jnp.pad(blk, ((0, rp - r), (0, 0))))
        off += rp
    slab = jnp.concatenate(rows, axis=0)     # (96, 128) for D=9, H=32, A=8
    dims = {"D": D, "H": H, "A": A, "lane_w": lane_w, "offsets": offsets}
    return slab, dims


# --------------------------------------------------------------------------
# Forward wrapper (run this under jax.jit)
# --------------------------------------------------------------------------
def imitation_lstm_forward(x, slab, *, dims, mm_dtype=jnp.float32):
    """x: (B, T, D) -> logits (B, T, A), matching PyTorch ImitationLSTM."""
    B, T, Din = x.shape
    D, H, A = dims["D"], dims["H"], dims["A"]
    lane_w = dims["lane_w"]
    assert Din == D
    BP = _round_up(max(B, 8), 8)             # pad batch to the sublane tile

    # Time-major flatten with zero-padded batch rows (fuses with pallas_call
    # under jit).
    xt = jnp.transpose(x, (1, 0, 2)).astype(jnp.float32)          # (T, B, D)
    x_flat = jnp.pad(xt, ((0, 0), (0, BP - B), (0, 0))).reshape(T * BP, D)

    kernel = functools.partial(_lstm_fc_kernel, T=T, BP=BP, D=D, H=H,
                               offs=dims["offsets"], mm_dtype=mm_dtype)

    out_flat = pl.pallas_call(
        kernel,
        out_shape=jax.ShapeDtypeStruct((T * BP, lane_w), jnp.float32),
        grid_spec=pltpu.PrefetchScalarGridSpec(
            num_scalar_prefetch=0,
            grid=(1,),
            in_specs=[
                pl.BlockSpec((T * BP, D), lambda i: (0, 0)),
                pl.BlockSpec(slab.shape, lambda i: (0, 0)),
            ],
            out_specs=pl.BlockSpec((T * BP, lane_w), lambda i: (0, 0)),
        ),
        compiler_params=pltpu.CompilerParams(
            dimension_semantics=("arbitrary",)),
    )(x_flat, slab)

    out = out_flat.reshape(T, BP, lane_w)[:, :B, :A]               # strip pads
    return jnp.transpose(out, (1, 0, 2))                           # (B, T, A)


# --------------------------------------------------------------------------
# Pure-JAX reference + init (for correctness check)
# --------------------------------------------------------------------------
def _reference_forward(x, params):
    w_ih, w_hh = params["w_ih"], params["w_hh"]
    b = params["b_ih"] + params["b_hh"]
    w_fc, b_fc = params["w_fc"], params["b_fc"]
    H = w_hh.shape[1]
    B, T, D = x.shape

    def step(carry, x_t):
        h, c = carry
        gates = x_t @ w_ih.T + h @ w_hh.T + b
        i = jax.nn.sigmoid(gates[:, 0 * H:1 * H])
        f = jax.nn.sigmoid(gates[:, 1 * H:2 * H])
        g = jnp.tanh(gates[:, 2 * H:3 * H])
        o = jax.nn.sigmoid(gates[:, 3 * H:4 * H])
        c = f * c + i * g
        h = o * jnp.tanh(c)
        return (h, c), h

    h0 = jnp.zeros((B, H), jnp.float32)
    c0 = jnp.zeros((B, H), jnp.float32)
    _, hs = lax.scan(step, (h0, c0), jnp.transpose(x, (1, 0, 2)))
    hs = jnp.transpose(hs, (1, 0, 2))
    return hs @ w_fc.T + b_fc


def init_params(key, input_dim, hidden_dim, num_actions):
    ks = jax.random.split(key, 6)
    s = 1.0 / jnp.sqrt(jnp.float32(hidden_dim))
    u = lambda k, shape: jax.random.uniform(k, shape, jnp.float32, -s, s)
    return {
        "w_ih": u(ks[0], (4 * hidden_dim, input_dim)),
        "w_hh": u(ks[1], (4 * hidden_dim, hidden_dim)),
        "b_ih": u(ks[2], (4 * hidden_dim,)),
        "b_hh": u(ks[3], (4 * hidden_dim,)),
        "w_fc": u(ks[4], (num_actions, hidden_dim)),
        "b_fc": u(ks[5], (num_actions,)),
    }


if __name__ == "__main__":
    # Small shapes consistent with ImitationLSTM(input_dim=9, hidden_dim=H,
    # num_actions=8); hidden reduced to 32 for the smoke test.
    B, T, D, H, A = 2, 8, 9, 32, 8

    key = jax.random.PRNGKey(0)
    k_x, k_p = jax.random.split(key)
    x = jax.random.normal(k_x, (B, T, D), jnp.float32)
    params = init_params(k_p, D, H, A)

    # One-time packing (outside the hot path).
    slab, dims = pack_params(params)
    ref = _reference_forward(x, params)

    # f32 MXU-operand path: exact parity with the reference (documented 1e-4
    # tolerance vs. the f32 model; MXU computes f32 via bf16 multi-pass).
    fwd_f32 = jax.jit(functools.partial(
        imitation_lstm_forward, dims=dims, mm_dtype=jnp.float32))
    logits = fwd_f32(x, slab)
    jax.block_until_ready(logits)
    assert logits.shape == (B, T, A)
    assert jnp.allclose(logits, ref, atol=1e-4, rtol=1e-4), "f32 mismatch"

    # bf16 MXU-operand path (single-pass matmuls on v6e/v7x); elementwise gate
    # math stays f32, so only matmul rounding differs -> loose tolerance.
    fwd_bf16 = jax.jit(functools.partial(
        imitation_lstm_forward, dims=dims, mm_dtype=jnp.bfloat16))
    logits_bf16 = fwd_bf16(x, slab)
    jax.block_until_ready(logits_bf16)
    assert logits_bf16.shape == (B, T, A)
    assert jnp.allclose(logits_bf16, ref, atol=1e-1, rtol=1e-1), "bf16 mismatch"

    print("KERNEL_OK")
</pallas_src>

<mosaic_0001>
module attributes {stable_mosaic.version = 11 : i64} {
  func.func @_lstm_fc_kernel(%arg0: i32, %arg1: memref<64x9xf32, #tpu.memory_space<vmem>>, %arg2: memref<96x128xf32, #tpu.memory_space<vmem>>, %arg3: memref<64x128xf32, #tpu.memory_space<vmem>>) attributes {dimension_semantics = [#tpu.dimension_semantics<arbitrary>], iteration_bounds = array<i64: 1>, scalar_prefetch = 0 : i64, scratch_operands = 0 : i64, tpu.core_type = #tpu.core_type<tc>, window_params = [{pipeline_mode = #tpu.pipeline_mode<synchronous>, transform_indices = @transform_0, window_bounds = array<i64: 64, 9>}, {pipeline_mode = #tpu.pipeline_mode<synchronous>, transform_indices = @transform_1, window_bounds = array<i64: 96, 128>}, {pipeline_mode = #tpu.pipeline_mode<synchronous>, transform_indices = @transform_2, window_bounds = array<i64: 64, 128>}]} {
    %c0 = arith.constant 0 : index
    %c0_0 = arith.constant 0 : index
    %0 = vector.load %arg2[%c0, %c0_0] : memref<96x128xf32, #tpu.memory_space<vmem>>, vector<9x128xf32>
    %c16 = arith.constant 16 : index
    %c0_1 = arith.constant 0 : index
    %1 = vector.load %arg2[%c16, %c0_1] : memref<96x128xf32, #tpu.memory_space<vmem>>, vector<32x128xf32>
    %c48 = arith.constant 48 : index
    %c0_2 = arith.constant 0 : index
    %2 = vector.load %arg2[%c48, %c0_2] : memref<96x128xf32, #tpu.memory_space<vmem>>, vector<1x128xf32>
    %c56 = arith.constant 56 : index
    %c0_3 = arith.constant 0 : index
    %3 = vector.load %arg2[%c56, %c0_3] : memref<96x128xf32, #tpu.memory_space<vmem>>, vector<32x128xf32>
    %c88 = arith.constant 88 : index
    %c0_4 = arith.constant 0 : index
    %4 = vector.load %arg2[%c88, %c0_4] : memref<96x128xf32, #tpu.memory_space<vmem>>, vector<1x128xf32>
    %c0_5 = arith.constant 0 : index
    %c0_6 = arith.constant 0 : index
    %5 = vector.load %arg1[%c0_5, %c0_6] : memref<64x9xf32, #tpu.memory_space<vmem>>, vector<64x9xf32>
    %cst = arith.constant dense<0.000000e+00> : vector<64x128xf32>
    %6 = tpu.matmul %5, %0, %cst {dimension_numbers = #tpu.dot_dimension_numbers<[1], [0], [0], [1], [0, 0, 1, 1], [], []>} : vector<64x9xf32>, vector<9x128xf32>, vector<64x128xf32> -> vector<64x128xf32>
    %7 = vector.broadcast %2 : vector<1x128xf32> to vector<64x128xf32>
    %8 = arith.addf %6, %7 : vector<64x128xf32>
    %cst_7 = arith.constant 0.000000e+00 : f32
    %9 = vector.broadcast %cst_7 : f32 to vector<8x32xf32>
    %cst_8 = arith.constant 0.000000e+00 : f32
    %10 = vector.broadcast %cst_8 : f32 to vector<8x32xf32>
    %11 = vector.extract_strided_slice %8 {offsets = [0, 0], sizes = [8, 128], strides = [1, 1]} : vector<64x128xf32> to vector<8x128xf32>
    %cst_9 = arith.constant dense<0.000000e+00> : vector<8x128xf32>
    %12 = tpu.matmul %9, %1, %cst_9 {dimension_numbers = #tpu.dot_dimension_numbers<[1], [0], [0], [1], [0, 0, 1, 1], [], []>} : vector<8x32xf32>, vector<32x128xf32>, vector<8x128xf32> -> vector<8x128xf32>
    %13 = arith.addf %11, %12 : vector<8x128xf32>
    %14 = arith.negf %13 : vector<8x128xf32>
    %15 = math.exp %14 : vector<8x128xf32>
    %cst_10 = arith.constant 1.000000e+00 : f32
    %16 = vector.broadcast %cst_10 : f32 to vector<8x128xf32>
    %17 = arith.addf %16, %15 : vector<8x128xf32>
    %18 = arith.divf %16, %17 : vector<8x128xf32>
    %19 = math.tanh %13 : vector<8x128xf32>
    %20 = vector.extract_strided_slice %18 {offsets = [0, 0], sizes = [8, 32], strides = [1, 1]} : vector<8x128xf32> to vector<8x32xf32>
    %21 = vector.extract_strided_slice %18 {offsets = [0, 32], sizes = [8, 32], strides = [1, 1]} : vector<8x128xf32> to vector<8x32xf32>
    %22 = vector.extract_strided_slice %19 {offsets = [0, 64], sizes = [8, 32], strides = [1, 1]} : vector<8x128xf32> to vector<8x32xf32>
    %23 = vector.extract_strided_slice %18 {offsets = [0, 96], sizes = [8, 32], strides = [1, 1]} : vector<8x128xf32> to vector<8x32xf32>
    %24 = arith.mulf %21, %10 : vector<8x32xf32>
    %25 = arith.mulf %20, %22 : vector<8x32xf32>
    %26 = arith.addf %24, %25 : vector<8x32xf32>
    %27 = math.tanh %26 : vector<8x32xf32>
    %28 = arith.mulf %23, %27 : vector<8x32xf32>
    %29 = vector.extract_strided_slice %8 {offsets = [8, 0], sizes = [8, 128], strides = [1, 1]} : vector<64x128xf32> to vector<8x128xf32>
    %cst_11 = arith.constant dense<0.000000e+00> : vector<8x128xf32>
    %30 = tpu.matmul %28, %1, %cst_11 {dimension_numbers = #tpu.dot_dimension_numbers<[1], [0], [0], [1], [0, 0, 1, 1], [], []>} : vector<8x32xf32>, vector<32x128xf32>, vector<8x128xf32> -> vector<8x128xf32>
    %31 = arith.addf %29, %30 : vector<8x128xf32>
    %32 = arith.negf %31 : vector<8x128xf32>
    %33 = math.exp %32 : vector<8x128xf32>
    %cst_12 = arith.constant 1.000000e+00 : f32
    %34 = vector.broadcast %cst_12 : f32 to vector<8x128xf32>
    %35 = arith.addf %34, %33 : vector<8x128xf32>
    %36 = arith.divf %34, %35 : vector<8x128xf32>
    %37 = math.tanh %31 : vector<8x128xf32>
    %38 = vector.extract_strided_slice %36 {offsets = [0, 0], sizes = [8, 32], strides = [1, 1]} : vector<8x128xf32> to vector<8x32xf32>
    %39 = vector.extract_strided_slice %36 {offsets = [0, 32], sizes = [8, 32], strides = [1, 1]} : vector<8x128xf32> to vector<8x32xf32>
    %40 = vector.extract_strided_slice %37 {offsets = [0, 64], sizes = [8, 32], strides = [1, 1]} : vector<8x128xf32> to vector<8x32xf32>
    %41 = vector.extract_strided_slice %36 {offsets = [0, 96], sizes = [8, 32], strides = [1, 1]} : vector<8x128xf32> to vector<8x32xf32>
    %42 = arith.mulf %39, %26 : vector<8x32xf32>
    %43 = arith.mulf %38, %40 : vector<8x32xf32>
    %44 = arith.addf %42, %43 : vector<8x32xf32>
    %45 = math.tanh %44 : vector<8x32xf32>
    %46 = arith.mulf %41, %45 : vector<8x32xf32>
    %47 = vector.extract_strided_slice %8 {offsets = [16, 0], sizes = [8, 128], strides = [1, 1]} : vector<64x128xf32> to vector<8x128xf32>
    %cst_13 = arith.constant dense<0.000000e+00> : vector<8x128xf32>
    %48 = tpu.matmul %46, %1, %cst_13 {dimension_numbers = #tpu.dot_dimension_numbers<[1], [0], [0], [1], [0, 0, 1, 1], [], []>} : vector<8x32xf32>, vector<32x128xf32>, vector<8x128xf32> -> vector<8x128xf32>
    %49 = arith.addf %47, %48 : vector<8x128xf32>
    %50 = arith.negf %49 : vector<8x128xf32>
    %51 = math.exp %50 : vector<8x128xf32>
    %cst_14 = arith.constant 1.000000e+00 : f32
    %52 = vector.broadcast %cst_14 : f32 to vector<8x128xf32>
    %53 = arith.addf %52, %51 : vector<8x128xf32>
    %54 = arith.divf %52, %53 : vector<8x128xf32>
    %55 = math.tanh %49 : vector<8x128xf32>
    %56 = vector.extract_strided_slice %54 {offsets = [0, 0], sizes = [8, 32], strides = [1, 1]} : vector<8x128xf32> to vector<8x32xf32>
    %57 = vector.extract_strided_slice %54 {offsets = [0, 32], sizes = [8, 32], strides = [1, 1]} : vector<8x128xf32> to vector<8x32xf32>
    %58 = vector.extract_strided_slice %55 {offsets = [0, 64], sizes = [8, 32], strides = [1, 1]} : vector<8x128xf32> to vector<8x32xf32>
    %59 = vector.extract_strided_slice %54 {offsets = [0, 96], sizes = [8, 32], strides = [1, 1]} : vector<8x128xf32> to vector<8x32xf32>
    %60 = arith.mulf %57, %44 : vector<8x32xf32>
    %61 = arith.mulf %56, %58 : vector<8x32xf32>
    %62 = arith.addf %60, %61 : vector<8x32xf32>
    %63 = math.tanh %62 : vector<8x32xf32>
    %64 = arith.mulf %59, %63 : vector<8x32xf32>
    %65 = vector.extract_strided_slice %8 {offsets = [24, 0], sizes = [8, 128], strides = [1, 1]} : vector<64x128xf32> to vector<8x128xf32>
    %cst_15 = arith.constant dense<0.000000e+00> : vector<8x128xf32>
    %66 = tpu.matmul %64, %1, %cst_15 {dimension_numbers = #tpu.dot_dimension_numbers<[1], [0], [0], [1], [0, 0, 1, 1], [], []>} : vector<8x32xf32>, vector<32x128xf32>, vector<8x128xf32> -> vector<8x128xf32>
    %67 = arith.addf %65, %66 : vector<8x128xf32>
    %68 = arith.negf %67 : vector<8x128xf32>
    %69 = math.exp %68 : vector<8x128xf32>
    %cst_16 = arith.constant 1.000000e+00 : f32
    %70 = vector.broadcast %cst_16 : f32 to vector<8x128xf32>
    %71 = arith.addf %70, %69 : vector<8x128xf32>
    %72 = arith.divf %70, %71 : vector<8x128xf32>
    %73 = math.tanh %67 : vector<8x128xf32>
    %74 = vector.extract_strided_slice %72 {offsets = [0, 0], sizes = [8, 32], strides = [1, 1]} : vector<8x128xf32> to vector<8x32xf32>
    %75 = vector.extract_strided_slice %72 {offsets = [0, 32], sizes = [8, 32], strides = [1, 1]} : vector<8x128xf32> to vector<8x32xf32>
    %76 = vector.extract_strided_slice %73 {offsets = [0, 64], sizes = [8, 32], strides = [1, 1]} : vector<8x128xf32> to vector<8x32xf32>
    %77 = vector.extract_strided_slice %72 {offsets = [0, 96], sizes = [8, 32], strides = [1, 1]} : vector<8x128xf32> to vector<8x32xf32>
    %78 = arith.mulf %75, %62 : vector<8x32xf32>
    %79 = arith.mulf %74, %76 : vector<8x32xf32>
    %80 = arith.addf %78, %79 : vector<8x32xf32>
    %81 = math.tanh %80 : vector<8x32xf32>
    %82 = arith.mulf %77, %81 : vector<8x32xf32>
    %83 = vector.extract_strided_slice %8 {offsets = [32, 0], sizes = [8, 128], strides = [1, 1]} : vector<64x128xf32> to vector<8x128xf32>
    %cst_17 = arith.constant dense<0.000000e+00> : vector<8x128xf32>
    %84 = tpu.matmul %82, %1, %cst_17 {dimension_numbers = #tpu.dot_dimension_numbers<[1], [0], [0], [1], [0, 0, 1, 1], [], []>} : vector<8x32xf32>, vector<32x128xf32>, vector<8x128xf32> -> vector<8x128xf32>
    %85 = arith.addf %83, %84 : vector<8x128xf32>
    %86 = arith.negf %85 : vector<8x128xf32>
    %87 = math.exp %86 : vector<8x128xf32>
    %cst_18 = arith.constant 1.000000e+00 : f32
    %88 = vector.broadcast %cst_18 : f32 to vector<8x128xf32>
    %89 = arith.addf %88, %87 : vector<8x128xf32>
    %90 = arith.divf %88, %89 : vector<8x128xf32>
    %91 = math.tanh %85 : vector<8x128xf32>
    %92 = vector.extract_strided_slice %90 {offsets = [0, 0], sizes = [8, 32], strides = [1, 1]} : vector<8x128xf32> to vector<8x32xf32>
    %93 = vector.extract_strided_slice %90 {offsets = [0, 32], sizes = [8, 32], strides = [1, 1]} : vector<8x128xf32> to vector<8x32xf32>
    %94 = vector.extract_strided_slice %91 {offsets = [0, 64], sizes = [8, 32], strides = [1, 1]} : vector<8x128xf32> to vector<8x32xf32>
    %95 = vector.extract_strided_slice %90 {offsets = [0, 96], sizes = [8, 32], strides = [1, 1]} : vector<8x128xf32> to vector<8x32xf32>
    %96 = arith.mulf %93, %80 : vector<8x32xf32>
    %97 = arith.mulf %92, %94 : vector<8x32xf32>
    %98 = arith.addf %96, %97 : vector<8x32xf32>
    %99 = math.tanh %98 : vector<8x32xf32>
    %100 = arith.mulf %95, %99 : vector<8x32xf32>
    %101 = vector.extract_strided_slice %8 {offsets = [40, 0], sizes = [8, 128], strides = [1, 1]} : vector<64x128xf32> to vector<8x128xf32>
    %cst_19 = arith.constant dense<0.000000e+00> : vector<8x128xf32>
    %102 = tpu.matmul %100, %1, %cst_19 {dimension_numbers = #tpu.dot_dimension_numbers<[1], [0], [0], [1], [0, 0, 1, 1], [], []>} : vector<8x32xf32>, vector<32x128xf32>, vector<8x128xf32> -> vector<8x128xf32>
    %103 = arith.addf %101, %102 : vector<8x128xf32>
    %104 = arith.negf %103 : vector<8x128xf32>
    %105 = math.exp %104 : vector<8x128xf32>
    %cst_20 = arith.constant 1.000000e+00 : f32
    %106 = vector.broadcast %cst_20 : f32 to vector<8x128xf32>
    %107 = arith.addf %106, %105 : vector<8x128xf32>
    %108 = arith.divf %106, %107 : vector<8x128xf32>
    %109 = math.tanh %103 : vector<8x128xf32>
    %110 = vector.extract_strided_slice %108 {offsets = [0, 0], sizes = [8, 32], strides = [1, 1]} : vector<8x128xf32> to vector<8x32xf32>
    %111 = vector.extract_strided_slice %108 {offsets = [0, 32], sizes = [8, 32], strides = [1, 1]} : vector<8x128xf32> to vector<8x32xf32>
    %112 = vector.extract_strided_slice %109 {offsets = [0, 64], sizes = [8, 32], strides = [1, 1]} : vector<8x128xf32> to vector<8x32xf32>
    %113 = vector.extract_strided_slice %108 {offsets = [0, 96], sizes = [8, 32], strides = [1, 1]} : vector<8x128xf32> to vector<8x32xf32>
    %114 = arith.mulf %111, %98 : vector<8x32xf32>
    %115 = arith.mulf %110, %112 : vector<8x32xf32>
    %116 = arith.addf %114, %115 : vector<8x32xf32>
    %117 = math.tanh %116 : vector<8x32xf32>
    %118 = arith.mulf %113, %117 : vector<8x32xf32>
    %119 = vector.extract_strided_slice %8 {offsets = [48, 0], sizes = [8, 128], strides = [1, 1]} : vector<64x128xf32> to vector<8x128xf32>
    %cst_21 = arith.constant dense<0.000000e+00> : vector<8x128xf32>
    %120 = tpu.matmul %118, %1, %cst_21 {dimension_numbers = #tpu.dot_dimension_numbers<[1], [0], [0], [1], [0, 0, 1, 1], [], []>} : vector<8x32xf32>, vector<32x128xf32>, vector<8x128xf32> -> vector<8x128xf32>
    %121 = arith.addf %119, %120 : vector<8x128xf32>
    %122 = arith.negf %121 : vector<8x128xf32>
    %123 = math.exp %122 : vector<8x128xf32>
    %cst_22 = arith.constant 1.000000e+00 : f32
    %124 = vector.broadcast %cst_22 : f32 to vector<8x128xf32>
    %125 = arith.addf %124, %123 : vector<8x128xf32>
    %126 = arith.divf %124, %125 : vector<8x128xf32>
    %127 = math.tanh %121 : vector<8x128xf32>
    %128 = vector.extract_strided_slice %126 {offsets = [0, 0], sizes = [8, 32], strides = [1, 1]} : vector<8x128xf32> to vector<8x32xf32>
    %129 = vector.extract_strided_slice %126 {offsets = [0, 32], sizes = [8, 32], strides = [1, 1]} : vector<8x128xf32> to vector<8x32xf32>
    %130 = vector.extract_strided_slice %127 {offsets = [0, 64], sizes = [8, 32], strides = [1, 1]} : vector<8x128xf32> to vector<8x32xf32>
    %131 = vector.extract_strided_slice %126 {offsets = [0, 96], sizes = [8, 32], strides = [1, 1]} : vector<8x128xf32> to vector<8x32xf32>
    %132 = arith.mulf %129, %116 : vector<8x32xf32>
    %133 = arith.mulf %128, %130 : vector<8x32xf32>
    %134 = arith.addf %132, %133 : vector<8x32xf32>
    %135 = math.tanh %134 : vector<8x32xf32>
    %136 = arith.mulf %131, %135 : vector<8x32xf32>
    %137 = vector.extract_strided_slice %8 {offsets = [56, 0], sizes = [8, 128], strides = [1, 1]} : vector<64x128xf32> to vector<8x128xf32>
    %cst_23 = arith.constant dense<0.000000e+00> : vector<8x128xf32>
    %138 = tpu.matmul %136, %1, %cst_23 {dimension_numbers = #tpu.dot_dimension_numbers<[1], [0], [0], [1], [0, 0, 1, 1], [], []>} : vector<8x32xf32>, vector<32x128xf32>, vector<8x128xf32> -> vector<8x128xf32>
    %139 = arith.addf %137, %138 : vector<8x128xf32>
    %140 = arith.negf %139 : vector<8x128xf32>
    %141 = math.exp %140 : vector<8x128xf32>
    %cst_24 = arith.constant 1.000000e+00 : f32
    %142 = vector.broadcast %cst_24 : f32 to vector<8x128xf32>
    %143 = arith.addf %142, %141 : vector<8x128xf32>
    %144 = arith.divf %142, %143 : vector<8x128xf32>
    %145 = math.tanh %139 : vector<8x128xf32>
    %146 = vector.extract_strided_slice %144 {offsets = [0, 0], sizes = [8, 32], strides = [1, 1]} : vector<8x128xf32> to vector<8x32xf32>
    %147 = vector.extract_strided_slice %144 {offsets = [0, 32], sizes = [8, 32], strides = [1, 1]} : vector<8x128xf32> to vector<8x32xf32>
    %148 = vector.extract_strided_slice %145 {offsets = [0, 64], sizes = [8, 32], strides = [1, 1]} : vector<8x128xf32> to vector<8x32xf32>
    %149 = vector.extract_strided_slice %144 {offsets = [0, 96], sizes = [8, 32], strides = [1, 1]} : vector<8x128xf32> to vector<8x32xf32>
    %150 = arith.mulf %147, %134 : vector<8x32xf32>
    %151 = arith.mulf %146, %148 : vector<8x32xf32>
    %152 = arith.addf %150, %151 : vector<8x32xf32>
    %153 = math.tanh %152 : vector<8x32xf32>
    %154 = arith.mulf %149, %153 : vector<8x32xf32>
    %155 = tpu.concatenate %28, %46, %64, %82, %100, %118, %136, %154 in 0 : vector<8x32xf32>, vector<8x32xf32>, vector<8x32xf32>, vector<8x32xf32>, vector<8x32xf32>, vector<8x32xf32>, vector<8x32xf32>, vector<8x32xf32> -> vector<64x32xf32>
    %cst_25 = arith.constant dense<0.000000e+00> : vector<64x128xf32>
    %156 = tpu.matmul %155, %3, %cst_25 {dimension_numbers = #tpu.dot_dimension_numbers<[1], [0], [0], [1], [0, 0, 1, 1], [], []>} : vector<64x32xf32>, vector<32x128xf32>, vector<64x128xf32> -> vector<64x128xf32>
    %157 = vector.broadcast %4 : vector<1x128xf32> to vector<64x128xf32>
    %158 = arith.addf %156, %157 : vector<64x128xf32>
    %c0_26 = arith.constant 0 : index
    %c0_27 = arith.constant 0 : index
    %159 = vector.load %arg3[%c0_26, %c0_27] : memref<64x128xf32, #tpu.memory_space<vmem>>, vector<64x128xf32>
    tpu.vector_store %arg3[%c0_26, %c0_27], %158 {strides = array<i32>} : memref<64x128xf32, #tpu.memory_space<vmem>>, vector<64x128xf32>,
    return
  }
  func.func @transform_0(%arg0: i32) -> (i32, i32) {
    %c0_i32 = arith.constant 0 : i32
    %c0_i32_0 = arith.constant 0 : i32
    %c0_i32_1 = arith.constant 0 : i32
    return %c0_i32, %c0_i32_0 : i32, i32
  }
  func.func @transform_1(%arg0: i32) -> (i32, i32) {
    %c0_i32 = arith.constant 0 : i32
    %c0_i32_0 = arith.constant 0 : i32
    %c0_i32_1 = arith.constant 0 : i32
    return %c0_i32, %c0_i32_0 : i32, i32
  }
  func.func @transform_2(%arg0: i32) -> (i32, i32) {
    %c0_i32 = arith.constant 0 : i32
    %c0_i32_0 = arith.constant 0 : i32
    %c0_i32_1 = arith.constant 0 : i32
    return %c0_i32, %c0_i32_0 : i32, i32
  }
}

</mosaic_0001>

<llo_original>
// kernel: imitation_lstm_forward.1
$region0: #{imitation_lstm_forward.1}
  #allocation0 [shape = 'u32[]', space=smem, size = 0x4, offset = 0x4, fixed_abs, tag = 'smem constant byte address 0x4 - core index']
  #allocation1 [shape = 'u32[144,128]{1,0:T(1,128)}', space=vmem, size = 0x12000, scoped, tag = 'internal scratch']
  %s0 = inlined_call_operand.vmem [shape: f32[64,9], index: 0, kind: input, shape index: {}]
  %s1 = inlined_call_operand.vmem [shape: f32[96,128], index: 1, kind: input, shape index: {}]
  %s2 = inlined_call_operand.vmem [shape: f32[64,128], index: 2, kind: output, shape index: {}]
  %s3 = sld [smem:[#allocation0]]
  $region18: #{imitation_lstm_forward.1} parent=0
    _
  %s5 = ssub.s32 1, %s3
  %s6 = scalar_select 0, %s5, %s3
  // Predicated region
  $region2: #{imitation_lstm_forward.1} parent=0 // pred_check
    _
  $region3: #{imitation_lstm_forward.1} parent=0 // pred_check_branch
    %8 = sbr.rel (0) target = $region5
  $region4: #{imitation_lstm_forward.1} parent=0 // pred_region
    _
  $region5: #{imitation_lstm_forward.1} parent=0 // pred_fallthru
    _
  // Predicated region
  $region6: #{imitation_lstm_forward.1} parent=0 // pred_check
    _
  $region7: #{imitation_lstm_forward.1} parent=0 // pred_check_branch
    %10 = sbr.rel (0) target = $region9
  $region8: #{imitation_lstm_forward.1} parent=0 // pred_region
    _
  $region9: #{imitation_lstm_forward.1} parent=0 // pred_fallthru
    _
  %v11 = vld [vmem:[%s1] sm:$0xff]
  %v12 = vld [vmem:[%s1 + $0x8] sm:$0x1]
  %v13 = vld [vmem:[%s1 + $0x10] sm:$0xff]
  %v14 = vld [vmem:[%s1 + $0x18] sm:$0xff]
  %v15 = vld [vmem:[%s1 + $0x20] sm:$0xff]
  %v16 = vld [vmem:[%s1 + $0x28] sm:$0xff]
  %v17 = vld [vmem:[%s1 + $0x30] sm:$0x1]
  %v18 = vld [vmem:[%s1 + $0x38] sm:$0xff]
  %v19 = vld [vmem:[%s1 + $0x40] sm:$0xff]
  %v20 = vld [vmem:[%s1 + $0x48] sm:$0xff]
  %v21 = vld [vmem:[%s1 + $0x50] sm:$0xff]
  %v22 = vld [vmem:[%s1 + $0x58] sm:$0x1]
  %v23 = vld [vmem:[%s0] sm:$0xff]
  %v24 = vld [vmem:[%s0 + $0x8] sm:$0xff]
  %v25 = vld [vmem:[%s0 + $0x10] sm:$0xff]
  %v26 = vld [vmem:[%s0 + $0x18] sm:$0xff]
  %v27 = vld [vmem:[%s0 + $0x20] sm:$0xff]
  %v28 = vld [vmem:[%s0 + $0x28] sm:$0xff]
  %v29 = vld [vmem:[%s0 + $0x30] sm:$0xff]
  %v30 = vld [vmem:[%s0 + $0x38] sm:$0xff]
  %v31 = vlaneseq
  %v32 = vshrl.u32 %v31, 7
  %v33 = vsub.s32 0, %v32
  %v34 = vrot.slane %v17, %v33
  %vm35 = vcmask 72704
  %v37 = vsel %vm35, %v23, 0
  %v40 = vsel %vm35, %v24, 0
  %v43 = vsel %vm35, %v25, 0
  %v46 = vsel %vm35, %v26, 0
  %v49 = vsel %vm35, %v27, 0
  %v52 = vsel %vm35, %v28, 0
  %v55 = vsel %vm35, %v29, 0
  %v58 = vsel %vm35, %v30, 0
  %vm60 = vcmask 1040384
  %v62 = vsel %vm60, %v12, 0
  %64 = vmatprep.subr.mxu0 0.0
  %65 = vmatpush1.msra.mxu0 %v11
  %66 = vmatprep.subr.mxu0 0.0
  %67 = vmatpush1.msra.mxu0 %v62
  %68 = vmatprep.subr.mxu0 0.0
  %69 = vmatpush1.msra.mxu0 0.0
  %70 = vmatprep.subr.mxu0 0.0
  %71 = vmatpush1.msra.mxu0 0.0
  %72 = vmatprep.subr.mxu0 0.0
  %73 = vmatpush1.msra.mxu0 0.0
  %74 = vmatprep.subr.mxu0 0.0
  %75 = vmatpush1.msra.mxu0 0.0
  %76 = vmatprep.subr.mxu0 0.0
  %77 = vmatpush1.msra.mxu0 0.0
  %78 = vmatprep.subr.mxu0 0.0
  %79 = vmatpush1.msra.mxu0 0.0
  %80 = vmatprep.subr.mxu0 0.0
  %81 = vmatpush1.msra.mxu0 0.0
  %82 = vmatprep.subr.mxu0 0.0
  %83 = vmatpush1.msra.mxu0 0.0
  %84 = vmatprep.subr.mxu0 0.0
  %85 = vmatpush1.msra.mxu0 0.0
  %86 = vmatprep.subr.mxu0 0.0
  %87 = vmatpush1.msra.mxu0 0.0
  %88 = vmatprep.subr.mxu0 0.0
  %89 = vmatpush1.msra.mxu0 0.0
  %90 = vmatprep.subr.mxu0 0.0
  %91 = vmatpush1.msra.mxu0 0.0
  %92 = vmatprep.subr.mxu0 0.0
  %93 = vmatpush1.msra.mxu0 0.0
  %94 = vmatprep.subr.mxu0 0.0
  %95 = vmatpush1.msra.mxu0 0.0
  %96 = vmatprep.subr.mxu0 0.0
  %97 = vmatpush1.msra.mxu0 0.0
  %98 = vmatprep.subr.mxu0 0.0
  %99 = vmatpush1.msra.mxu0 0.0
  %100 = vmatprep.subr.mxu0 0.0
  %101 = vmatpush1.msra.mxu0 0.0
  %102 = vmatprep.subr.mxu0 0.0
  %103 = vmatpush1.msra.mxu0 0.0
  %104 = vmatprep.subr.mxu0 0.0
  %105 = vmatpush1.msra.mxu0 0.0
  %106 = vmatprep.subr.mxu0 0.0
  %107 = vmatpush1.msra.mxu0 0.0
  %108 = vmatprep.subr.mxu0 0.0
  %109 = vmatpush1.msra.mxu0 0.0
  %110 = vmatprep.subr.mxu0 0.0
  %111 = vmatpush1.msra.mxu0 0.0
  %112 = vmatprep.subr.mxu0 0.0
  %113 = vmatpush1.msra.mxu0 0.0
  %114 = vmatprep.subr.mxu0 0.0
  %115 = vmatpush1.msra.mxu0 0.0
  %116 = vmatprep.subr.mxu0 0.0
  %117 = vmatpush1.msra.mxu0 0.0
  %118 = vmatprep.subr.mxu0 0.0
  %119 = vmatpush1.msra.mxu0 0.0
  %120 = vmatprep.subr.mxu0 0.0
  %121 = vmatpush1.msra.mxu0 0.0
  %122 = vmatprep.subr.mxu0 0.0
  %123 = vmatpush1.msra.mxu0 0.0
  %124 = vmatprep.subr.mxu0 0.0
  %125 = vmatpush1.msra.mxu0 0.0
  %126 = vmatprep.subr.mxu0 0.0
  %127 = vmatpush1.msra.mxu0 0.0
  %128 = vmatprep.mubr.f32.mxu0 0.0
  %129 = vmatmul.mubr.f32.gmra.mrb[0].mxu0 %v37
  %v130 = vpop.f32.mrb[0].mxu0
  %v131 = vadd.f32 %v34, %v130
  %v132 = vpop.f32.mrb[0].mxu0
  %133 = vmatprep.mubr.f32.mxu0 0.0
  %134 = vmatmul.mubr.f32.gmra.mrb[0].mxu0 %v40
  %v135 = vpop.f32.mrb[0].mxu0
  %v136 = vadd.f32 %v34, %v135
  %v137 = vpop.f32.mrb[0].mxu0
  %138 = vmatprep.mubr.f32.mxu0 0.0
  %139 = vmatmul.mubr.f32.gmra.mrb[0].mxu0 %v43
  %v140 = vpop.f32.mrb[0].mxu0
  %v141 = vadd.f32 %v34, %v140
  %v142 = vpop.f32.mrb[0].mxu0
  %143 = vmatprep.mubr.f32.mxu0 0.0
  %144 = vmatmul.mubr.f32.gmra.mrb[0].mxu0 %v46
  %v145 = vpop.f32.mrb[0].mxu0
  %v146 = vadd.f32 %v34, %v145
  %v147 = vpop.f32.mrb[0].mxu0
  %148 = vmatprep.mubr.f32.mxu0 0.0
  %149 = vmatmul.mubr.f32.gmra.mrb[0].mxu0 %v49
  %v150 = vpop.f32.mrb[0].mxu0
  %v151 = vadd.f32 %v34, %v150
  %v152 = vpop.f32.mrb[0].mxu0
  %153 = vmatprep.mubr.f32.mxu0 0.0
  %154 = vmatmul.mubr.f32.gmra.mrb[0].mxu0 %v52
  %v155 = vpop.f32.mrb[0].mxu0
  %v156 = vadd.f32 %v34, %v155
  %v157 = vpop.f32.mrb[0].mxu0
  %158 = vmatprep.mubr.f32.mxu0 0.0
  %159 = vmatmul.mubr.f32.gmra.mrb[0].mxu0 %v55
  %v160 = vpop.f32.mrb[0].mxu0
  %v161 = vadd.f32 %v34, %v160
  %v162 = vpop.f32.mrb[0].mxu0
  %163 = vmatprep.mubr.f32.mxu0 0.0
  %164 = vmatmul.mubr.f32.gmra.mrb[0].mxu0 %v58
  %v165 = vpop.f32.mrb[0].mxu0
  %v166 = vadd.f32 %v34, %v165
  %v167 = vpop.f32.mrb[0].mxu0
  %168 = vdwg.mxu0
  %vm169 = vcmask 261120
  %v171 = vsel %vm169, 0.0, 0
  %173 = vmatprep.subr.mxu0 0.0
  %174 = vmatpush1.msra.mxu0 %v13
  %175 = vmatprep.subr.mxu0 0.0
  %176 = vmatpush1.msra.mxu0 %v14
  %177 = vmatprep.subr.mxu0 0.0
  %178 = vmatpush1.msra.mxu0 %v15
  %179 = vmatprep.subr.mxu0 0.0
  %180 = vmatpush1.msra.mxu0 %v16
  %181 = vmatprep.subr.mxu0 0.0
  %182 = vmatpush1.msra.mxu0 0.0
  %183 = vmatprep.subr.mxu0 0.0
  %184 = vmatpush1.msra.mxu0 0.0
  %185 = vmatprep.subr.mxu0 0.0
  %186 = vmatpush1.msra.mxu0 0.0
  %187 = vmatprep.subr.mxu0 0.0
  %188 = vmatpush1.msra.mxu0 0.0
  %189 = vmatprep.subr.mxu0 0.0
  %190 = vmatpush1.msra.mxu0 0.0
  %191 = vmatprep.subr.mxu0 0.0
  %192 = vmatpush1.msra.mxu0 0.0
  %193 = vmatprep.subr.mxu0 0.0
  %194 = vmatpush1.msra.mxu0 0.0
  %195 = vmatprep.subr.mxu0 0.0
  %196 = vmatpush1.msra.mxu0 0.0
  %197 = vmatprep.subr.mxu0 0.0
  %198 = vmatpush1.msra.mxu0 0.0
  %199 = vmatprep.subr.mxu0 0.0
  %200 = vmatpush1.msra.mxu0 0.0
  %201 = vmatprep.subr.mxu0 0.0
  %202 = vmatpush1.msra.mxu0 0.0
  %203 = vmatprep.subr.mxu0 0.0
  %204 = vmatpush1.msra.mxu0 0.0
  %205 = vmatprep.subr.mxu0 0.0
  %206 = vmatpush1.msra.mxu0 0.0
  %207 = vmatprep.subr.mxu0 0.0
  %208 = vmatpush1.msra.mxu0 0.0
  %209 = vmatprep.subr.mxu0 0.0
  %210 = vmatpush1.msra.mxu0 0.0
  %211 = vmatprep.subr.mxu0 0.0
  %212 = vmatpush1.msra.mxu0 0.0
  %213 = vmatprep.subr.mxu0 0.0
  %214 = vmatpush1.msra.mxu0 0.0
  %215 = vmatprep.subr.mxu0 0.0
  %216 = vmatpush1.msra.mxu0 0.0
  %217 = vmatprep.subr.mxu0 0.0
  %218 = vmatpush1.msra.mxu0 0.0
  %219 = vmatprep.subr.mxu0 0.0
  %220 = vmatpush1.msra.mxu0 0.0
  %221 = vmatprep.subr.mxu0 0.0
  %222 = vmatpush1.msra.mxu0 0.0
  %223 = vmatprep.subr.mxu0 0.0
  %224 = vmatpush1.msra.mxu0 0.0
  %225 = vmatprep.subr.mxu0 0.0
  %226 = vmatpush1.msra.mxu0 0.0
  %227 = vmatprep.subr.mxu0 0.0
  %228 = vmatpush1.msra.mxu0 0.0
  %229 = vmatprep.subr.mxu0 0.0
  %230 = vmatpush1.msra.mxu0 0.0
  %231 = vmatprep.subr.mxu0 0.0
  %232 = vmatpush1.msra.mxu0 0.0
  %233 = vmatprep.subr.mxu0 0.0
  %234 = vmatpush1.msra.mxu0 0.0
  %235 = vmatprep.subr.mxu0 0.0
  %236 = vmatpush1.msra.mxu0 0.0
  %237 = vmatprep.mubr.f32.mxu0 0.0
  %238 = vmatmul.mubr.f32.gmra.mrb[0].mxu0 %v171
  %v239 = vpop.f32.mrb[0].mxu0
  %v240 = vadd.f32 0.0, %v239
  %v241 = vpop.f32.mrb[0].mxu0
  %242 = vdwg.mxu0
  %v243 = vadd.f32 %v131, %v240
  %v244 = vxor.u32 %v243, 2147483648
  %v245 = vmul.f32 %v244, 1.442695
  %v246 = vpow.pop %v245
  %v247 = vadd.f32 %v246, 1.0
  %v248 = vrcp.pop %v247
  %v249 = vmul.f32 1.0, %v248
  %v250 = vtanh.pop %v243
  %v251 = vmul.f32 %v249, 0.0
  %253 = vrot.lane.b32.xlu0 %v250, 64
  %v254 = vpop.permute.xlu0 %253
  %v256 = vmul.f32 %v249, %v254
  %258 = vrot.lane.b32.xlu0 %v256, 32
  %v259 = vpop.permute.xlu0 %258
  %v261 = vadd.f32 %v251, %v259
  %v262 = vtanh.pop %v261
  %264 = vrot.lane.b32.xlu0 %v262, 64
  %v265 = vpop.permute.xlu0 %264
  %v267 = vmul.f32 %v249, %v265
  %269 = vrot.lane.b32.xlu0 %v267, 32
  %v270 = vpop.permute.xlu0 %269
  %v271 = vsel %vm169, %v270, 0
  %273 = vmatprep.subr.mxu0 0.0
  %274 = vmatpush1.msra.mxu0 %v13
  %275 = vmatprep.subr.mxu0 0.0
  %276 = vmatpush1.msra.mxu0 %v14
  %277 = vmatprep.subr.mxu0 0.0
  %278 = vmatpush1.msra.mxu0 %v15
  %279 = vmatprep.subr.mxu0 0.0
  %280 = vmatpush1.msra.mxu0 %v16
  %281 = vmatprep.subr.mxu0 0.0
  %282 = vmatpush1.msra.mxu0 0.0
  %283 = vmatprep.subr.mxu0 0.0
  %284 = vmatpush1.msra.mxu0 0.0
  %285 = vmatprep.subr.mxu0 0.0
  %286 = vmatpush1.msra.mxu0 0.0
  %287 = vmatprep.subr.mxu0 0.0
  %288 = vmatpush1.msra.mxu0 0.0
  %289 = vmatprep.subr.mxu0 0.0
  %290 = vmatpush1.msra.mxu0 0.0
  %291 = vmatprep.subr.mxu0 0.0
  %292 = vmatpush1.msra.mxu0 0.0
  %293 = vmatprep.subr.mxu0 0.0
  %294 = vmatpush1.msra.mxu0 0.0
  %295 = vmatprep.subr.mxu0 0.0
  %296 = vmatpush1.msra.mxu0 0.0
  %297 = vmatprep.subr.mxu0 0.0
  %298 = vmatpush1.msra.mxu0 0.0
  %299 = vmatprep.subr.mxu0 0.0
  %300 = vmatpush1.msra.mxu0 0.0
  %301 = vmatprep.subr.mxu0 0.0
  %302 = vmatpush1.msra.mxu0 0.0
  %303 = vmatprep.subr.mxu0 0.0
  %304 = vmatpush1.msra.mxu0 0.0
  %305 = vmatprep.subr.mxu0 0.0
  %306 = vmatpush1.msra.mxu0 0.0
  %307 = vmatprep.subr.mxu0 0.0
  %308 = vmatpush1.msra.mxu0 0.0
  %309 = vmatprep.subr.mxu0 0.0
  %310 = vmatpush1.msra.mxu0 0.0
  %311 = vmatprep.subr.mxu0 0.0
  %312 = vmatpush1.msra.mxu0 0.0
  %313 = vmatprep.subr.mxu0 0.0
  %314 = vmatpush1.msra.mxu0 0.0
  %315 = vmatprep.subr.mxu0 0.0
  %316 = vmatpush1.msra.mxu0 0.0
  %317 = vmatprep.subr.mxu0 0.0
  %318 = vmatpush1.msra.mxu0 0.0
  %319 = vmatprep.subr.mxu0 0.0
  %320 = vmatpush1.msra.mxu0 0.0
  %321 = vmatprep.subr.mxu0 0.0
  %322 = vmatpush1.msra.mxu0 0.0
  %323 = vmatprep.subr.mxu0 0.0
  %324 = vmatpush1.msra.mxu0 0.0
  %325 = vmatprep.subr.mxu0 0.0
  %326 = vmatpush1.msra.mxu0 0.0
  %327 = vmatprep.subr.mxu0 0.0
  %328 = vmatpush1.msra.mxu0 0.0
  %329 = vmatprep.subr.mxu0 0.0
  %330 = vmatpush1.msra.mxu0 0.0
  %331 = vmatprep.subr.mxu0 0.0
  %332 = vmatpush1.msra.mxu0 0.0
  %333 = vmatprep.subr.mxu0 0.0
  %334 = vmatpush1.msra.mxu0 0.0
  %335 = vmatprep.subr.mxu0 0.0
  %336 = vmatpush1.msra.mxu0 0.0
  %337 = vmatprep.mubr.f32.mxu0 0.0
  %338 = vmatmul.mubr.f32.gmra.mrb[0].mxu0 %v271
  %v339 = vpop.f32.mrb[0].mxu0
  %v340 = vadd.f32 0.0, %v339
  %v341 = vpop.f32.mrb[0].mxu0
  %342 = vdwg.mxu0
  %v343 = vadd.f32 %v136, %v340
  %v344 = vxor.u32 %v343, 2147483648
  %v345 = vmul.f32 %v344, 1.442695
  %v346 = vpow.pop %v345
  %v347 = vadd.f32 %v346, 1.0
  %v348 = vrcp.pop %v347
  %v349 = vmul.f32 1.0, %v348
  %v350 = vtanh.pop %v343
  %v351 = vmul.f32 %v349, %v261
  %353 = vrot.lane.b32.xlu0 %v350, 64
  %v354 = vpop.permute.xlu0 %353
  %v356 = vmul.f32 %v349, %v354
  %358 = vrot.lane.b32.xlu0 %v356, 32
  %v359 = vpop.permute.xlu0 %358
  %v361 = vadd.f32 %v351, %v359
  %v362 = vtanh.pop %v361
  %364 = vrot.lane.b32.xlu0 %v362, 64
  %v365 = vpop.permute.xlu0 %364
  %v367 = vmul.f32 %v349, %v365
  %369 = vrot.lane.b32.xlu0 %v367, 32
  %v370 = vpop.permute.xlu0 %369
  %v371 = vsel %vm169, %v370, 0
  %373 = vmatprep.subr.mxu0 0.0
  %374 = vmatpush1.msra.mxu0 %v13
  %375 = vmatprep.subr.mxu0 0.0
  %376 = vmatpush1.msra.mxu0 %v14
  %377 = vmatprep.subr.mxu0 0.0
  %378 = vmatpush1.msra.mxu0 %v15
  %379 = vmatprep.subr.mxu0 0.0
  %380 = vmatpush1.msra.mxu0 %v16
  %381 = vmatprep.subr.mxu0 0.0
  %382 = vmatpush1.msra.mxu0 0.0
  %383 = vmatprep.subr.mxu0 0.0
  %384 = vmatpush1.msra.mxu0 0.0
  %385 = vmatprep.subr.mxu0 0.0
  %386 = vmatpush1.msra.mxu0 0.0
  %387 = vmatprep.subr.mxu0 0.0
  %388 = vmatpush1.msra.mxu0 0.0
  %389 = vmatprep.subr.mxu0 0.0
  %390 = vmatpush1.msra.mxu0 0.0
  %391 = vmatprep.subr.mxu0 0.0
  %392 = vmatpush1.msra.mxu0 0.0
  %393 = vmatprep.subr.mxu0 0.0
  %394 = vmatpush1.msra.mxu0 0.0
  %395 = vmatprep.subr.mxu0 0.0
  %396 = vmatpush1.msra.mxu0 0.0
  %397 = vmatprep.subr.mxu0 0.0
  %398 = vmatpush1.msra.mxu0 0.0
  %399 = vmatprep.subr.mxu0 0.0
  %400 = vmatpush1.msra.mxu0 0.0
  %401 = vmatprep.subr.mxu0 0.0
  %402 = vmatpush1.msra.mxu0 0.0
  %403 = vmatprep.subr.mxu0 0.0
  %404 = vmatpush1.msra.mxu0 0.0
  %405 = vmatprep.subr.mxu0 0.0
  %406 = vmatpush1.msra.mxu0 0.0
  %407 = vmatprep.subr.mxu0 0.0
  %408 = vmatpush1.msra.mxu0 0.0
  %409 = vmatprep.subr.mxu0 0.0
  %410 = vmatpush1.msra.mxu0 0.0
  %411 = vmatprep.subr.mxu0 0.0
  %412 = vmatpush1.msra.mxu0 0.0
  %413 = vmatprep.subr.mxu0 0.0
  %414 = vmatpush1.msra.mxu0 0.0
  %415 = vmatprep.subr.mxu0 0.0
  %416 = vmatpush1.msra.mxu0 0.0
  %417 = vmatprep.subr.mxu0 0.0
  %418 = vmatpush1.msra.mxu0 0.0
  %419 = vmatprep.subr.mxu0 0.0
  %420 = vmatpush1.msra.mxu0 0.0
  %421 = vmatprep.subr.mxu0 0.0
  %422 = vmatpush1.msra.mxu0 0.0
  %423 = vmatprep.subr.mxu0 0.0
  %424 = vmatpush1.msra.mxu0 0.0
  %425 = vmatprep.subr.mxu0 0.0
  %426 = vmatpush1.msra.mxu0 0.0
  %427 = vmatprep.subr.mxu0 0.0
  %428 = vmatpush1.msra.mxu0 0.0
  %429 = vmatprep.subr.mxu0 0.0
  %430 = vmatpush1.msra.mxu0 0.0
  %431 = vmatprep.subr.mxu0 0.0
  %432 = vmatpush1.msra.mxu0 0.0
  %433 = vmatprep.subr.mxu0 0.0
  %434 = vmatpush1.msra.mxu0 0.0
  %435 = vmatprep.subr.mxu0 0.0
  %436 = vmatpush1.msra.mxu0 0.0
  %437 = vmatprep.mubr.f32.mxu0 0.0
  %438 = vmatmul.mubr.f32.gmra.mrb[0].mxu0 %v371
  %v439 = vpop.f32.mrb[0].mxu0
  %v440 = vadd.f32 0.0, %v439
  %v441 = vpop.f32.mrb[0].mxu0
  %442 = vdwg.mxu0
  %v443 = vadd.f32 %v141, %v440
  %v444 = vxor.u32 %v443, 2147483648
  %v445 = vmul.f32 %v444, 1.442695
  %v446 = vpow.pop %v445
  %v447 = vadd.f32 %v446, 1.0
  %v448 = vrcp.pop %v447
  %v449 = vmul.f32 1.0, %v448
  %v450 = vtanh.pop %v443
  %v451 = vmul.f32 %v449, %v361
  %453 = vrot.lane.b32.xlu0 %v450, 64
  %v454 = vpop.permute.xlu0 %453
  %v456 = vmul.f32 %v449, %v454
  %458 = vrot.lane.b32.xlu0 %v456, 32
  %v459 = vpop.permute.xlu0 %458
  %v461 = vadd.f32 %v451, %v459
  %v462 = vtanh.pop %v461
  %464 = vrot.lane.b32.xlu0 %v462, 64
  %v465 = vpop.permute.xlu0 %464
  %v467 = vmul.f32 %v449, %v465
  %469 = vrot.lane.b32.xlu0 %v467, 32
  %v470 = vpop.permute.xlu0 %469
  %v471 = vsel %vm169, %v470, 0
  %473 = vmatprep.subr.mxu0 0.0
  %474 = vmatpush1.msra.mxu0 %v13
  %475 = vmatprep.subr.mxu0 0.0
  %476 = vmatpush1.msra.mxu0 %v14
  %477 = vmatprep.subr.mxu0 0.0
  %478 = vmatpush1.msra.mxu0 %v15
  %479 = vmatprep.subr.mxu0 0.0
  %480 = vmatpush1.msra.mxu0 %v16
  %481 = vmatprep.subr.mxu0 0.0
  %482 = vmatpush1.msra.mxu0 0.0
  %483 = vmatprep.subr.mxu0 0.0
  %484 = vmatpush1.msra.mxu0 0.0
  %485 = vmatprep.subr.mxu0 0.0
  %486 = vmatpush1.msra.mxu0 0.0
  %487 = vmatprep.subr.mxu0 0.0
  %488 = vmatpush1.msra.mxu0 0.0
  %489 = vmatprep.subr.mxu0 0.0
  %490 = vmatpush1.msra.mxu0 0.0
  %491 = vmatprep.subr.mxu0 0.0
  %492 = vmatpush1.msra.mxu0 0.0
  %493 = vmatprep.subr.mxu0 0.0
  %494 = vmatpush1.msra.mxu0 0.0
  %495 = vmatprep.subr.mxu0 0.0
  %496 = vmatpush1.msra.mxu0 0.0
  %497 = vmatprep.subr.mxu0 0.0
  %498 = vmatpush1.msra.mxu0 0.0
  %499 = vmatprep.subr.mxu0 0.0
  %500 = vmatpush1.msra.mxu0 0.0
  %501 = vmatprep.subr.mxu0 0.0
  %502 = vmatpush1.msra.mxu0 0.0
  %503 = vmatprep.subr.mxu0 0.0
  %504 = vmatpush1.msra.mxu0 0.0
  %505 = vmatprep.subr.mxu0 0.0
  %506 = vmatpush1.msra.mxu0 0.0
  %507 = vmatprep.subr.mxu0 0.0
  %508 = vmatpush1.msra.mxu0 0.0
  %509 = vmatprep.subr.mxu0 0.0
  %510 = vmatpush1.msra.mxu0 0.0
  %511 = vmatprep.subr.mxu0 0.0
  %512 = vmatpush1.msra.mxu0 0.0
  %513 = vmatprep.subr.mxu0 0.0
  %514 = vmatpush1.msra.mxu0 0.0
  %515 = vmatprep.subr.mxu0 0.0
  %516 = vmatpush1.msra.mxu0 0.0
  %517 = vmatprep.subr.mxu0 0.0
  %518 = vmatpush1.msra.mxu0 0.0
  %519 = vmatprep.subr.mxu0 0.0
  %520 = vmatpush1.msra.mxu0 0.0
  %521 = vmatprep.subr.mxu0 0.0
  %522 = vmatpush1.msra.mxu0 0.0
  %523 = vmatprep.subr.mxu0 0.0
  %524 = vmatpush1.msra.mxu0 0.0
  %525 = vmatprep.subr.mxu0 0.0
  %526 = vmatpush1.msra.mxu0 0.0
  %527 = vmatprep.subr.mxu0 0.0
  %528 = vmatpush1.msra.mxu0 0.0
  %529 = vmatprep.subr.mxu0 0.0
  %530 = vmatpush1.msra.mxu0 0.0
  %531 = vmatprep.subr.mxu0 0.0
  %532 = vmatpush1.msra.mxu0 0.0
  %533 = vmatprep.subr.mxu0 0.0
  %534 = vmatpush1.msra.mxu0 0.0
  %535 = vmatprep.subr.mxu0 0.0
  %536 = vmatpush1.msra.mxu0 0.0
  %537 = vmatprep.mubr.f32.mxu0 0.0
  %538 = vmatmul.mubr.f32.gmra.mrb[0].mxu0 %v471
  %v539 = vpop.f32.mrb[0].mxu0
  %v540 = vadd.f32 0.0, %v539
  %v541 = vpop.f32.mrb[0].mxu0
  %542 = vdwg.mxu0
  %v543 = vadd.f32 %v146, %v540
  %v544 = vxor.u32 %v543, 2147483648
  %v545 = vmul.f32 %v544, 1.442695
  %v546 = vpow.pop %v545
  %v547 = vadd.f32 %v546, 1.0
  %v548 = vrcp.pop %v547
  %v549 = vmul.f32 1.0, %v548
  %v550 = vtanh.pop %v543
  %v551 = vmul.f32 %v549, %v461
  %553 = vrot.lane.b32.xlu0 %v550, 64
  %v554 = vpop.permute.xlu0 %553
  %v556 = vmul.f32 %v549, %v554
  %558 = vrot.lane.b32.xlu0 %v556, 32
  %v559 = vpop.permute.xlu0 %558
  %v561 = vadd.f32 %v551, %v559
  %v562 = vtanh.pop %v561
  %564 = vrot.lane.b32.xlu0 %v562, 64
  %v565 = vpop.permute.xlu0 %564
  %v567 = vmul.f32 %v549, %v565
  %569 = vrot.lane.b32.xlu0 %v567, 32
  %v570 = vpop.permute.xlu0 %569
  %v571 = vsel %vm169, %v570, 0
  %573 = vmatprep.subr.mxu0 0.0
  %574 = vmatpush1.msra.mxu0 %v13
  %575 = vmatprep.subr.mxu0 0.0
  %576 = vmatpush1.msra.mxu0 %v14
  %577 = vmatprep.subr.mxu0 0.0
  %578 = vmatpush1.msra.mxu0 %v15
  %579 = vmatprep.subr.mxu0 0.0
  %580 = vmatpush1.msra.mxu0 %v16
  %581 = vmatprep.subr.mxu0 0.0
  %582 = vmatpush1.msra.mxu0 0.0
  %583 = vmatprep.subr.mxu0 0.0
  %584 = vmatpush1.msra.mxu0 0.0
  %585 = vmatprep.subr.mxu0 0.0
  %586 = vmatpush1.msra.mxu0 0.0
  %587 = vmatprep.subr.mxu0 0.0
  %588 = vmatpush1.msra.mxu0 0.0
  %589 = vmatprep.subr.mxu0 0.0
  %590 = vmatpush1.msra.mxu0 0.0
  %591 = vmatprep.subr.mxu0 0.0
  %592 = vmatpush1.msra.mxu0 0.0
  %593 = vmatprep.subr.mxu0 0.0
  %594 = vmatpush1.msra.mxu0 0.0
  %595 = vmatprep.subr.mxu0 0.0
  %596 = vmatpush1.msra.mxu0 0.0
  %597 = vmatprep.subr.mxu0 0.0
  %598 = vmatpush1.msra.mxu0 0.0
  %599 = vmatprep.subr.mxu0 0.0
  %600 = vmatpush1.msra.mxu0 0.0
  %601 = vmatprep.subr.mxu0 0.0
  %602 = vmatpush1.msra.mxu0 0.0
  %603 = vmatprep.subr.mxu0 0.0
  %604 = vmatpush1.msra.mxu0 0.0
  %605 = vmatprep.subr.mxu0 0.0
  %606 = vmatpush1.msra.mxu0 0.0
  %607 = vmatprep.subr.mxu0 0.0
  %608 = vmatpush1.msra.mxu0 0.0
  %609 = vmatprep.subr.mxu0 0.0
  %610 = vmatpush1.msra.mxu0 0.0
  %611 = vmatprep.subr.mxu0 0.0
  %612 = vmatpush1.msra.mxu0 0.0
  %613 = vmatprep.subr.mxu0 0.0
  %614 = vmatpush1.msra.mxu0 0.0
  %615 = vmatprep.subr.mxu0 0.0
  %616 = vmatpush1.msra.mxu0 0.0
  %617 = vmatprep.subr.mxu0 0.0
  %618 = vmatpush1.msra.mxu0 0.0
  %619 = vmatprep.subr.mxu0 0.0
  %620 = vmatpush1.msra.mxu0 0.0
  %621 = vmatprep.subr.mxu0 0.0
  %622 = vmatpush1.msra.mxu0 0.0
  %623 = vmatprep.subr.mxu0 0.0
  %624 = vmatpush1.msra.mxu0 0.0
  %625 = vmatprep.subr.mxu0 0.0
  %626 = vmatpush1.msra.mxu0 0.0
  %627 = vmatprep.subr.mxu0 0.0
  %628 = vmatpush1.msra.mxu0 0.0
  %629 = vmatprep.subr.mxu0 0.0
  %630 = vmatpush1.msra.mxu0 0.0
  %631 = vmatprep.subr.mxu0 0.0
  %632 = vmatpush1.msra.mxu0 0.0
  %633 = vmatprep.subr.mxu0 0.0
  %634 = vmatpush1.msra.mxu0 0.0
  %635 = vmatprep.subr.mxu0 0.0
  %636 = vmatpush1.msra.mxu0 0.0
  %637 = vmatprep.mubr.f32.mxu0 0.0
  %638 = vmatmul.mubr.f32.gmra.mrb[0].mxu0 %v571
  %v639 = vpop.f32.mrb[0].mxu0
  %v640 = vadd.f32 0.0, %v639
  %v641 = vpop.f32.mrb[0].mxu0
  %642 = vdwg.mxu0
  %v643 = vadd.f32 %v151, %v640
  %v644 = vxor.u32 %v643, 2147483648
  %v645 = vmul.f32 %v644, 1.442695
  %v646 = vpow.pop %v645
  %v647 = vadd.f32 %v646, 1.0
  %v648 = vrcp.pop %v647
  %v649 = vmul.f32 1.0, %v648
  %v650 = vtanh.pop %v643
  %v651 = vmul.f32 %v649, %v561
  %653 = vrot.lane.b32.xlu0 %v650, 64
  %v654 = vpop.permute.xlu0 %653
  %v656 = vmul.f32 %v649, %v654
  %658 = vrot.lane.b32.xlu0 %v656, 32
  %v659 = vpop.permute.xlu0 %658
  %v661 = vadd.f32 %v651, %v659
  %v662 = vtanh.pop %v661
  %664 = vrot.lane.b32.xlu0 %v662, 64
  %v665 = vpop.permute.xlu0 %664
  %v667 = vmul.f32 %v649, %v665
  %669 = vrot.lane.b32.xlu0 %v667, 32
  %v670 = vpop.permute.xlu0 %669
  %v671 = vsel %vm169, %v670, 0
  %673 = vmatprep.subr.mxu0 0.0
  %674 = vmatpush1.msra.mxu0 %v13
  %675 = vmatprep.subr.mxu0 0.0
  %676 = vmatpush1.msra.mxu0 %v14
  %677 = vmatprep.subr.mxu0 0.0
  %678 = vmatpush1.msra.mxu0 %v15
  %679 = vmatprep.subr.mxu0 0.0
  %680 = vmatpush1.msra.mxu0 %v16
  %681 = vmatprep.subr.mxu0 0.0
  %682 = vmatpush1.msra.mxu0 0.0
  %683 = vmatprep.subr.mxu0 0.0
  %684 = vmatpush1.msra.mxu0 0.0
  %685 = vmatprep.subr.mxu0 0.0
  %686 = vmatpush1.msra.mxu0 0.0
  %687 = vmatprep.subr.mxu0 0.0
  %688 = vmatpush1.msra.mxu0 0.0
  %689 = vmatprep.subr.mxu0 0.0
  %690 = vmatpush1.msra.mxu0 0.0
  %691 = vmatprep.subr.mxu0 0.0
  %692 = vmatpush1.msra.mxu0 0.0
  %693 = vmatprep.subr.mxu0 0.0
  %694 = vmatpush1.msra.mxu0 0.0
  %695 = vmatprep.subr.mxu0 0.0
  %696 = vmatpush1.msra.mxu0 0.0
  %697 = vmatprep.subr.mxu0 0.0
  %698 = vmatpush1.msra.mxu0 0.0
  %699 = vmatprep.subr.mxu0 0.0
  %700 = vmatpush1.msra.mxu0 0.0
  %701 = vmatprep.subr.mxu0 0.0
  %702 = vmatpush1.msra.mxu0 0.0
  %703 = vmatprep.subr.mxu0 0.0
  %704 = vmatpush1.msra.mxu0 0.0
  %705 = vmatprep.subr.mxu0 0.0
  %706 = vmatpush1.msra.mxu0 0.0
  %707 = vmatprep.subr.mxu0 0.0
  %708 = vmatpush1.msra.mxu0 0.0
  %709 = vmatprep.subr.mxu0 0.0
  %710 = vmatpush1.msra.mxu0 0.0
  %711 = vmatprep.subr.mxu0 0.0
  %712 = vmatpush1.msra.mxu0 0.0
  %713 = vmatprep.subr.mxu0 0.0
  %714 = vmatpush1.msra.mxu0 0.0
  %715 = vmatprep.subr.mxu0 0.0
  %716 = vmatpush1.msra.mxu0 0.0
  %717 = vmatprep.subr.mxu0 0.0
  %718 = vmatpush1.msra.mxu0 0.0
  %719 = vmatprep.subr.mxu0 0.0
  %720 = vmatpush1.msra.mxu0 0.0
  %721 = vmatprep.subr.mxu0 0.0
  %722 = vmatpush1.msra.mxu0 0.0
  %723 = vmatprep.subr.mxu0 0.0
  %724 = vmatpush1.msra.mxu0 0.0
  %725 = vmatprep.subr.mxu0 0.0
  %726 = vmatpush1.msra.mxu0 0.0
  %727 = vmatprep.subr.mxu0 0.0
  %728 = vmatpush1.msra.mxu0 0.0
  %729 = vmatprep.subr.mxu0 0.0
  %730 = vmatpush1.msra.mxu0 0.0
  %731 = vmatprep.subr.mxu0 0.0
  %732 = vmatpush1.msra.mxu0 0.0
  %733 = vmatprep.subr.mxu0 0.0
  %734 = vmatpush1.msra.mxu0 0.0
  %735 = vmatprep.subr.mxu0 0.0
  %736 = vmatpush1.msra.mxu0 0.0
  %737 = vmatprep.mubr.f32.mxu0 0.0
  %738 = vmatmul.mubr.f32.gmra.mrb[0].mxu0 %v671
  %v739 = vpop.f32.mrb[0].mxu0
  %v740 = vadd.f32 0.0, %v739
  %v741 = vpop.f32.mrb[0].mxu0
  %742 = vdwg.mxu0
  %v743 = vadd.f32 %v156, %v740
  %v744 = vxor.u32 %v743, 2147483648
  %v745 = vmul.f32 %v744, 1.442695
  %v746 = vpow.pop %v745
  %v747 = vadd.f32 %v746, 1.0
  %v748 = vrcp.pop %v747
  %v749 = vmul.f32 1.0, %v748
  %v750 = vtanh.pop %v743
  %v751 = vmul.f32 %v749, %v661
  %753 = vrot.lane.b32.xlu0 %v750, 64
  %v754 = vpop.permute.xlu0 %753
  %v756 = vmul.f32 %v749, %v754
  %758 = vrot.lane.b32.xlu0 %v756, 32
  %v759 = vpop.permute.xlu0 %758
  %v761 = vadd.f32 %v751, %v759
  %v762 = vtanh.pop %v761
  %764 = vrot.lane.b32.xlu0 %v762, 64
  %v765 = vpop.permute.xlu0 %764
  %v767 = vmul.f32 %v749, %v765
  %769 = vrot.lane.b32.xlu0 %v767, 32
  %v770 = vpop.permute.xlu0 %769
  %v771 = vsel %vm169, %v770, 0
  %773 = vmatprep.subr.mxu0 0.0
  %774 = vmatpush1.msra.mxu0 %v13
  %775 = vmatprep.subr.mxu0 0.0
  %776 = vmatpush1.msra.mxu0 %v14
  %777 = vmatprep.subr.mxu0 0.0
  %778 = vmatpush1.msra.mxu0 %v15
  %779 = vmatprep.subr.mxu0 0.0
  %780 = vmatpush1.msra.mxu0 %v16
  %781 = vmatprep.subr.mxu0 0.0
  %782 = vmatpush1.msra.mxu0 0.0
  %783 = vmatprep.subr.mxu0 0.0
  %784 = vmatpush1.msra.mxu0 0.0
  %785 = vmatprep.subr.mxu0 0.0
  %786 = vmatpush1.msra.mxu0 0.0
  %787 = vmatprep.subr.mxu0 0.0
  %788 = vmatpush1.msra.mxu0 0.0
  %789 = vmatprep.subr.mxu0 0.0
  %790 = vmatpush1.msra.mxu0 0.0
  %791 = vmatprep.subr.mxu0 0.0
  %792 = vmatpush1.msra.mxu0 0.0
  %793 = vmatprep.subr.mxu0 0.0
  %794 = vmatpush1.msra.mxu0 0.0
  %795 = vmatprep.subr.mxu0 0.0
  %796 = vmatpush1.msra.mxu0 0.0
  %797 = vmatprep.subr.mxu0 0.0
  %798 = vmatpush1.msra.mxu0 0.0
  %799 = vmatprep.subr.mxu0 0.0
  %800 = vmatpush1.msra.mxu0 0.0
  %801 = vmatprep.subr.mxu0 0.0
  %802 = vmatpush1.msra.mxu0 0.0
  %803 = vmatprep.subr.mxu0 0.0
  %804 = vmatpush1.msra.mxu0 0.0
  %805 = vmatprep.subr.mxu0 0.0
  %806 = vmatpush1.msra.mxu0 0.0
  %807 = vmatprep.subr.mxu0 0.0
  %808 = vmatpush1.msra.mxu0 0.0
  %809 = vmatprep.subr.mxu0 0.0
  %810 = vmatpush1.msra.mxu0 0.0
  %811 = vmatprep.subr.mxu0 0.0
  %812 = vmatpush1.msra.mxu0 0.0
  %813 = vmatprep.subr.mxu0 0.0
  %814 = vmatpush1.msra.mxu0 0.0
  %815 = vmatprep.subr.mxu0 0.0
  %816 = vmatpush1.msra.mxu0 0.0
  %817 = vmatprep.subr.mxu0 0.0
  %818 = vmatpush1.msra.mxu0 0.0
  %819 = vmatprep.subr.mxu0 0.0
  %820 = vmatpush1.msra.mxu0 0.0
  %821 = vmatprep.subr.mxu0 0.0
  %822 = vmatpush1.msra.mxu0 0.0
  %823 = vmatprep.subr.mxu0 0.0
  %824 = vmatpush1.msra.mxu0 0.0
  %825 = vmatprep.subr.mxu0 0.0
  %826 = vmatpush1.msra.mxu0 0.0
  %827 = vmatprep.subr.mxu0 0.0
  %828 = vmatpush1.msra.mxu0 0.0
  %829 = vmatprep.subr.mxu0 0.0
  %830 = vmatpush1.msra.mxu0 0.0
  %831 = vmatprep.subr.mxu0 0.0
  %832 = vmatpush1.msra.mxu0 0.0
  %833 = vmatprep.subr.mxu0 0.0
  %834 = vmatpush1.msra.mxu0 0.0
  %835 = vmatprep.subr.mxu0 0.0
  %836 = vmatpush1.msra.mxu0 0.0
  %837 = vmatprep.mubr.f32.mxu0 0.0
  %838 = vmatmul.mubr.f32.gmra.mrb[0].mxu0 %v771
  %v839 = vpop.f32.mrb[0].mxu0
  %v840 = vadd.f32 0.0, %v839
  %v841 = vpop.f32.mrb[0].mxu0
  %842 = vdwg.mxu0
  %v843 = vadd.f32 %v161, %v840
  %v844 = vxor.u32 %v843, 2147483648
  %v845 = vmul.f32 %v844, 1.442695
  %v846 = vpow.pop %v845
  %v847 = vadd.f32 %v846, 1.0
  %v848 = vrcp.pop %v847
  %v849 = vmul.f32 1.0, %v848
  %v850 = vtanh.pop %v843
  %v851 = vmul.f32 %v849, %v761
  %853 = vrot.lane.b32.xlu0 %v850, 64
  %v854 = vpop.permute.xlu0 %853
  %v856 = vmul.f32 %v849, %v854
  %858 = vrot.lane.b32.xlu0 %v856, 32
  %v859 = vpop.permute.xlu0 %858
  %v861 = vadd.f32 %v851, %v859
  %v862 = vtanh.pop %v861
  %864 = vrot.lane.b32.xlu0 %v862, 64
  %v865 = vpop.permute.xlu0 %864
  %v867 = vmul.f32 %v849, %v865
  %869 = vrot.lane.b32.xlu0 %v867, 32
  %v870 = vpop.permute.xlu0 %869
  %v871 = vsel %vm169, %v870, 0
  %873 = vmatprep.subr.mxu0 0.0
  %874 = vmatpush1.msra.mxu0 %v13
  %875 = vmatprep.subr.mxu0 0.0
  %876 = vmatpush1.msra.mxu0 %v14
  %877 = vmatprep.subr.mxu0 0.0
  %878 = vmatpush1.msra.mxu0 %v15
  %879 = vmatprep.subr.mxu0 0.0
  %880 = vmatpush1.msra.mxu0 %v16
  %881 = vmatprep.subr.mxu0 0.0
  %882 = vmatpush1.msra.mxu0 0.0
  %883 = vmatprep.subr.mxu0 0.0
  %884 = vmatpush1.msra.mxu0 0.0
  %885 = vmatprep.subr.mxu0 0.0
  %886 = vmatpush1.msra.mxu0 0.0
  %887 = vmatprep.subr.mxu0 0.0
  %888 = vmatpush1.msra.mxu0 0.0
  %889 = vmatprep.subr.mxu0 0.0
  %890 = vmatpush1.msra.mxu0 0.0
  %891 = vmatprep.subr.mxu0 0.0
  %892 = vmatpush1.msra.mxu0 0.0
  %893 = vmatprep.subr.mxu0 0.0
  %894 = vmatpush1.msra.mxu0 0.0
  %895 = vmatprep.subr.mxu0 0.0
  %896 = vmatpush1.msra.mxu0 0.0
  %897 = vmatprep.subr.mxu0 0.0
  %898 = vmatpush1.msra.mxu0 0.0
  %899 = vmatprep.subr.mxu0 0.0
  %900 = vmatpush1.msra.mxu0 0.0
  %901 = vmatprep.subr.mxu0 0.0
  %902 = vmatpush1.msra.mxu0 0.0
  %903 = vmatprep.subr.mxu0 0.0
  %904 = vmatpush1.msra.mxu0 0.0
  %905 = vmatprep.subr.mxu0 0.0
  %906 = vmatpush1.msra.mxu0 0.0
  %907 = vmatprep.subr.mxu0 0.0
  %908 = vmatpush1.msra.mxu0 0.0
  %909 = vmatprep.subr.mxu0 0.0
  %910 = vmatpush1.msra.mxu0 0.0
  %911 = vmatprep.subr.mxu0 0.0
  %912 = vmatpush1.msra.mxu0 0.0
  %913 = vmatprep.subr.mxu0 0.0
  %914 = vmatpush1.msra.mxu0 0.0
  %915 = vmatprep.subr.mxu0 0.0
  %916 = vmatpush1.msra.mxu0 0.0
  %917 = vmatprep.subr.mxu0 0.0
  %918 = vmatpush1.msra.mxu0 0.0
  %919 = vmatprep.subr.mxu0 0.0
  %920 = vmatpush1.msra.mxu0 0.0
  %921 = vmatprep.subr.mxu0 0.0
  %922 = vmatpush1.msra.mxu0 0.0
  %923 = vmatprep.subr.mxu0 0.0
  %924 = vmatpush1.msra.mxu0 0.0
  %925 = vmatprep.subr.mxu0 0.0
  %926 = vmatpush1.msra.mxu0 0.0
  %927 = vmatprep.subr.mxu0 0.0
  %928 = vmatpush1.msra.mxu0 0.0
  %929 = vmatprep.subr.mxu0 0.0
  %930 = vmatpush1.msra.mxu0 0.0
  %931 = vmatprep.subr.mxu0 0.0
  %932 = vmatpush1.msra.mxu0 0.0
  %933 = vmatprep.subr.mxu0 0.0
  %934 = vmatpush1.msra.mxu0 0.0
  %935 = vmatprep.subr.mxu0 0.0
  %936 = vmatpush1.msra.mxu0 0.0
  %937 = vmatprep.mubr.f32.mxu0 0.0
  %938 = vmatmul.mubr.f32.gmra.mrb[0].mxu0 %v871
  %v939 = vpop.f32.mrb[0].mxu0
  %v940 = vadd.f32 0.0, %v939
  %v941 = vpop.f32.mrb[0].mxu0
  %942 = vdwg.mxu0
  %v943 = vadd.f32 %v166, %v940
  %v944 = vxor.u32 %v943, 2147483648
  %v945 = vmul.f32 %v944, 1.442695
  %v946 = vpow.pop %v945
  %v947 = vadd.f32 %v946, 1.0
  %v948 = vrcp.pop %v947
  %v949 = vmul.f32 1.0, %v948
  %v950 = vtanh.pop %v943
  %v951 = vmul.f32 %v949, %v861
  %953 = vrot.lane.b32.xlu0 %v950, 64
  %v954 = vpop.permute.xlu0 %953
  %v956 = vmul.f32 %v949, %v954
  %958 = vrot.lane.b32.xlu0 %v956, 32
  %v959 = vpop.permute.xlu0 %958
  %v961 = vadd.f32 %v951, %v959
  %v962 = vtanh.pop %v961
  %964 = vrot.lane.b32.xlu0 %v962, 64
  %v965 = vpop.permute.xlu0 %964
  %v967 = vmul.f32 %v949, %v965
  %v968 = vlaneseq
  %v969 = vshrl.u32 %v968, 7
  %v970 = vsub.s32 0, %v969
  %v971 = vrot.slane %v22, %v970
  %973 = vrot.lane.b32.xlu0 %v967, 32
  %v974 = vpop.permute.xlu0 %973
  %v975 = vsel %vm169, %v974, 0
  %977 = vmatprep.subr.mxu0 0.0
  %978 = vmatpush1.msra.mxu0 %v18
  %979 = vmatprep.subr.mxu0 0.0
  %980 = vmatpush1.msra.mxu0 %v19
  %981 = vmatprep.subr.mxu0 0.0
  %982 = vmatpush1.msra.mxu0 %v20
  %983 = vmatprep.subr.mxu0 0.0
  %984 = vmatpush1.msra.mxu0 %v21
  %985 = vmatprep.subr.mxu0 0.0
  %986 = vmatpush1.msra.mxu0 0.0
  %987 = vmatprep.subr.mxu0 0.0
  %988 = vmatpush1.msra.mxu0 0.0
  %989 = vmatprep.subr.mxu0 0.0
  %990 = vmatpush1.msra.mxu0 0.0
  %991 = vmatprep.subr.mxu0 0.0
  %992 = vmatpush1.msra.mxu0 0.0
  %993 = vmatprep.subr.mxu0 0.0
  %994 = vmatpush1.msra.mxu0 0.0
  %995 = vmatprep.subr.mxu0 0.0
  %996 = vmatpush1.msra.mxu0 0.0
  %997 = vmatprep.subr.mxu0 0.0
  %998 = vmatpush1.msra.mxu0 0.0
  %999 = vmatprep.subr.mxu0 0.0
  %1000 = vmatpush1.msra.mxu0 0.0
  %1001 = vmatprep.subr.mxu0 0.0
  %1002 = vmatpush1.msra.mxu0 0.0
  %1003 = vmatprep.subr.mxu0 0.0
  %1004 = vmatpush1.msra.mxu0 0.0
  %1005 = vmatprep.subr.mxu0 0.0
  %1006 = vmatpush1.msra.mxu0 0.0
  %1007 = vmatprep.subr.mxu0 0.0
  %1008 = vmatpush1.msra.mxu0 0.0
  %1009 = vmatprep.subr.mxu0 0.0
  %1010 = vmatpush1.msra.mxu0 0.0
  %1011 = vmatprep.subr.mxu0 0.0
  %1012 = vmatpush1.msra.mxu0 0.0
  %1013 = vmatprep.subr.mxu0 0.0
  %1014 = vmatpush1.msra.mxu0 0.0
  %1015 = vmatprep.subr.mxu0 0.0
  %1016 = vmatpush1.msra.mxu0 0.0
  %1017 = vmatprep.subr.mxu0 0.0
  %1018 = vmatpush1.msra.mxu0 0.0
  %1019 = vmatprep.subr.mxu0 0.0
  %1020 = vmatpush1.msra.mxu0 0.0
  %1021 = vmatprep.subr.mxu0 0.0
  %1022 = vmatpush1.msra.mxu0 0.0
  %1023 = vmatprep.subr.mxu0 0.0
  %1024 = vmatpush1.msra.mxu0 0.0
  %1025 = vmatprep.subr.mxu0 0.0
  %1026 = vmatpush1.msra.mxu0 0.0
  %1027 = vmatprep.subr.mxu0 0.0
  %1028 = vmatpush1.msra.mxu0 0.0
  %1029 = vmatprep.subr.mxu0 0.0
  %1030 = vmatpush1.msra.mxu0 0.0
  %1031 = vmatprep.subr.mxu0 0.0
  %1032 = vmatpush1.msra.mxu0 0.0
  %1033 = vmatprep.subr.mxu0 0.0
  %1034 = vmatpush1.msra.mxu0 0.0
  %1035 = vmatprep.subr.mxu0 0.0
  %1036 = vmatpush1.msra.mxu0 0.0
  %1037 = vmatprep.subr.mxu0 0.0
  %1038 = vmatpush1.msra.mxu0 0.0
  %1039 = vmatprep.subr.mxu0 0.0
  %1040 = vmatpush1.msra.mxu0 0.0
  %1041 = vmatprep.mubr.f32.mxu0 0.0
  %1042 = vmatmul.mubr.f32.gmra.mrb[0].mxu0 %v271
  %v1043 = vpop.f32.mrb[0].mxu0
  %v1044 = vadd.f32 %v971, %v1043
  %v1045 = vpop.f32.mrb[0].mxu0
  %1046 = vmatprep.mubr.f32.mxu0 0.0
  %1047 = vmatmul.mubr.f32.gmra.mrb[0].mxu0 %v371
  %v1048 = vpop.f32.mrb[0].mxu0
  %v1049 = vadd.f32 %v971, %v1048
  %v1050 = vpop.f32.mrb[0].mxu0
  %1051 = vmatprep.mubr.f32.mxu0 0.0
  %1052 = vmatmul.mubr.f32.gmra.mrb[0].mxu0 %v471
  %v1053 = vpop.f32.mrb[0].mxu0
  %v1054 = vadd.f32 %v971, %v1053
  %v1055 = vpop.f32.mrb[0].mxu0
  %1056 = vmatprep.mubr.f32.mxu0 0.0
  %1057 = vmatmul.mubr.f32.gmra.mrb[0].mxu0 %v571
  %v1058 = vpop.f32.mrb[0].mxu0
  %v1059 = vadd.f32 %v971, %v1058
  %v1060 = vpop.f32.mrb[0].mxu0
  %1061 = vmatprep.mubr.f32.mxu0 0.0
  %1062 = vmatmul.mubr.f32.gmra.mrb[0].mxu0 %v671
  %v1063 = vpop.f32.mrb[0].mxu0
  %v1064 = vadd.f32 %v971, %v1063
  %v1065 = vpop.f32.mrb[0].mxu0
  %1066 = vmatprep.mubr.f32.mxu0 0.0
  %1067 = vmatmul.mubr.f32.gmra.mrb[0].mxu0 %v771
  %v1068 = vpop.f32.mrb[0].mxu0
  %v1069 = vadd.f32 %v971, %v1068
  %v1070 = vpop.f32.mrb[0].mxu0
  %1071 = vmatprep.mubr.f32.mxu0 0.0
  %1072 = vmatmul.mubr.f32.gmra.mrb[0].mxu0 %v871
  %v1073 = vpop.f32.mrb[0].mxu0
  %v1074 = vadd.f32 %v971, %v1073
  %v1075 = vpop.f32.mrb[0].mxu0
  %1076 = vmatprep.mubr.f32.mxu0 0.0
  %1077 = vmatmul.mubr.f32.gmra.mrb[0].mxu0 %v975
  %v1078 = vpop.f32.mrb[0].mxu0
  %v1079 = vadd.f32 %v971, %v1078
  %v1080 = vpop.f32.mrb[0].mxu0
  %1081 = vdwg.mxu0
  %1082 = vst [vmem:[%s2] sm:$0xff] %v1044
  %1083 = vst [vmem:[%s2 + $0x8] sm:$0xff] %v1049
  %1084 = vst [vmem:[%s2 + $0x10] sm:$0xff] %v1054
  %1085 = vst [vmem:[%s2 + $0x18] sm:$0xff] %v1059
  %1086 = vst [vmem:[%s2 + $0x20] sm:$0xff] %v1064
  %1087 = vst [vmem:[%s2 + $0x28] sm:$0xff] %v1069
  %1088 = vst [vmem:[%s2 + $0x30] sm:$0xff] %v1074
  %1089 = vst [vmem:[%s2 + $0x38] sm:$0xff] %v1079
  // Predicated region
  $region10: #{imitation_lstm_forward.1} parent=0 // pred_check
    _
  $region11: #{imitation_lstm_forward.1} parent=0 // pred_check_branch
    %1091 = sbr.rel (0) target = $region13
  $region12: #{imitation_lstm_forward.1} parent=0 // pred_region
    _
  $region13: #{imitation_lstm_forward.1} parent=0 // pred_fallthru
    _
  // Predicated region
  $region14: #{imitation_lstm_forward.1} parent=0 // pred_check
    _
  $region15: #{imitation_lstm_forward.1} parent=0 // pred_check_branch
    %1093 = sbr.rel (0) target = $region17
  $region16: #{imitation_lstm_forward.1} parent=0 // pred_region
    _
  $region17: #{imitation_lstm_forward.1} parent=0 // pred_fallthru
    _

</llo_original>
